<compile_context>
chip_gen: v5e
topology: v5e:2x2
jax: 0.10.0
libtpu: 0.0.40
codegen_flags: <defaults>
</compile_context>

<pallas_src>
import functools

import jax
import jax.numpy as jnp
from jax.experimental import pallas as pl
from jax.experimental.pallas import tpu as pltpu

BN_EPS = 1e-5      # torch.nn.BatchNorm1d default
OUT_PAD = 128      # lane-dense padded Q-head width (real output is column 0)


def _round_up(x, m):
    return ((x + m - 1) // m) * m


def critic_kernel(state_ref, action_ref,
                  w1_ref, b1_ref, bn_g_ref, bn_b_ref, bn_m_ref, bn_v_ref,
                  w2s_ref, w2a_ref, b2_ref,
                  w3_ref, b3_ref,
                  o_ref):
    # Inputs arrive as f32 rows; cast to bf16 only for the MXU matmuls.
    x = state_ref[...].astype(jnp.bfloat16)
    a = action_ref[...].astype(jnp.bfloat16)

    # ---- state_net: Linear -> BatchNorm1d (eval, running stats) -> ReLU ----
    h1 = jnp.dot(x, w1_ref[...], preferred_element_type=jnp.float32) + b1_ref[...]
    scale = bn_g_ref[...] * jax.lax.rsqrt(bn_v_ref[...] + BN_EPS)
    h1 = (h1 - bn_m_ref[...]) * scale + bn_b_ref[...]
    h1 = jnp.maximum(h1, 0.0)

    # ---- combined_net layer 1: Linear over cat([h1, action]) -> ReLU ------
    # cat([h1, a]) @ W2 == h1 @ W2_state + a @ W2_action
    h2 = (jnp.dot(h1.astype(jnp.bfloat16), w2s_ref[...],
                  preferred_element_type=jnp.float32)
          + jnp.dot(a, w2a_ref[...], preferred_element_type=jnp.float32)
          + b2_ref[...])
    h2 = jnp.maximum(h2, 0.0)

    # ---- combined_net layer 2: Linear -> Q (lane-padded, unmasked store) --
    q = jnp.dot(h2.astype(jnp.bfloat16), w3_ref[...],
                preferred_element_type=jnp.float32) + b3_ref[...]
    o_ref[...] = q.astype(o_ref.dtype)


@functools.partial(jax.jit, static_argnames=("tb",))
def critic_forward(state, action, params, tb=256):
    """Fused Critic forward.  state: (B, state_dim) f32, action: (B, action_dim) f32."""
    (w1, b1, bn_g, bn_b, bn_m, bn_v, w2s, w2a, b2, w3p, b3p) = params

    B, state_dim = state.shape
    action_dim = action.shape[1]
    hidden_dim = w1.shape[1]

    # Batch tile: multiple of 8 (sublane), capped at `tb`; pad B up to a
    # multiple of the tile so every grid step sees a full block.
    tile_b = min(tb, max(8, _round_up(B, 8)))
    bp = _round_up(max(B, 8), tile_b)
    if bp != B:
        state = jnp.pad(state, ((0, bp - B), (0, 0)))
        action = jnp.pad(action, ((0, bp - B), (0, 0)))

    grid = (bp // tile_b,)

    def row_spec(dim):
        # Per-batch-tile block for inputs / output.
        return pl.BlockSpec((tile_b, dim), lambda i: (i, 0))

    def resident_spec(shape):
        # Whole-array block, constant index -> stays VMEM-resident across the grid.
        return pl.BlockSpec(shape, lambda i: (0, 0))

    operands = (state, action,
                w1, b1, bn_g, bn_b, bn_m, bn_v,
                w2s, w2a, b2, w3p, b3p)
    in_specs = ([row_spec(state_dim), row_spec(action_dim)]
                + [resident_spec(op.shape) for op in operands[2:]])

    flops = 2 * bp * (state_dim * hidden_dim
                      + (hidden_dim + action_dim) * hidden_dim
                      + hidden_dim * OUT_PAD)
    bytes_accessed = (sum(int(op.size) * op.dtype.itemsize for op in operands)
                      + bp * OUT_PAD * 4)

    out = pl.pallas_call(
        critic_kernel,
        out_shape=jax.ShapeDtypeStruct((bp, OUT_PAD), jnp.float32),
        grid=grid,
        in_specs=in_specs,
        out_specs=row_spec(OUT_PAD),
        compiler_params=pltpu.CompilerParams(
            dimension_semantics=("parallel",)),
        cost_estimate=pl.CostEstimate(
            flops=flops, transcendentals=0, bytes_accessed=bytes_accessed),
    )(*operands)

    return out[:B, :1]


def xavier_uniform(key, fan_in, fan_out):
    # torch.nn.init.xavier_uniform_ on a (fan_out, fan_in) weight; we store the
    # transpose (fan_in, fan_out) — the symmetric uniform init is equivalent.
    a = (6.0 / (fan_in + fan_out)) ** 0.5
    return jax.random.uniform(key, (fan_in, fan_out), jnp.float32, -a, a)


def init_critic_params(key, state_dim, action_dim, hidden_dim):
    k1, k2, k3 = jax.random.split(key, 3)

    # state_net Linear + BatchNorm1d (fresh running stats: mean=0, var=1)
    w1 = xavier_uniform(k1, state_dim, hidden_dim).astype(jnp.bfloat16)
    b1 = jnp.zeros((1, hidden_dim), jnp.float32)
    bn_g = jnp.ones((1, hidden_dim), jnp.float32)
    bn_b = jnp.zeros((1, hidden_dim), jnp.float32)
    bn_m = jnp.zeros((1, hidden_dim), jnp.float32)   # running_mean
    bn_v = jnp.ones((1, hidden_dim), jnp.float32)    # running_var

    # combined_net Linear(H + action_dim, H), split along the concat axis.
    w2 = xavier_uniform(k2, hidden_dim + action_dim, hidden_dim)
    w2s = w2[:hidden_dim].astype(jnp.bfloat16)
    w2a = w2[hidden_dim:].astype(jnp.bfloat16)
    b2 = jnp.zeros((1, hidden_dim), jnp.float32)

    # combined_net Linear(H, 1), lane-padded to OUT_PAD (only column 0 real).
    w3 = xavier_uniform(k3, hidden_dim, 1)
    w3p = jnp.zeros((hidden_dim, OUT_PAD), jnp.float32).at[:, :1].set(w3)
    w3p = w3p.astype(jnp.bfloat16)
    b3p = jnp.zeros((1, OUT_PAD), jnp.float32)

    return (w1, b1, bn_g, bn_b, bn_m, bn_v, w2s, w2a, b2, w3p, b3p)


def critic_forward_ref(state, action, params):
    """Plain-JAX reference with matching bf16 matmul precision."""
    (w1, b1, bn_g, bn_b, bn_m, bn_v, w2s, w2a, b2, w3p, b3p) = params
    x = state.astype(jnp.bfloat16)
    a = action.astype(jnp.bfloat16)

    h1 = jnp.dot(x, w1, preferred_element_type=jnp.float32) + b1
    h1 = (h1 - bn_m) * (bn_g * jax.lax.rsqrt(bn_v + BN_EPS)) + bn_b
    h1 = jnp.maximum(h1, 0.0)

    h2 = (jnp.dot(h1.astype(jnp.bfloat16), w2s, preferred_element_type=jnp.float32)
          + jnp.dot(a, w2a, preferred_element_type=jnp.float32) + b2)
    h2 = jnp.maximum(h2, 0.0)

    q = jnp.dot(h2.astype(jnp.bfloat16), w3p, preferred_element_type=jnp.float32) + b3p
    return q[:, :1]


if __name__ == "__main__":
    # Small, module-consistent shapes.
    batch, state_dim, action_dim, hidden_dim = 8, 16, 4, 256

    key = jax.random.PRNGKey(0)
    k_param, k_state, k_action = jax.random.split(key, 3)
    params = init_critic_params(k_param, state_dim, action_dim, hidden_dim)
    state = jax.random.normal(k_state, (batch, state_dim), jnp.float32)
    action = jax.random.normal(k_action, (batch, action_dim), jnp.float32)

    out = critic_forward(state, action, params)
    jax.block_until_ready(out)

    ref = critic_forward_ref(state, action, params)
    assert out.shape == (batch, 1), out.shape
    assert jnp.allclose(out, ref, atol=1e-3, rtol=1e-3), "mismatch vs reference"

    print("KERNEL_OK")
</pallas_src>

<mosaic_0001>
module attributes {stable_mosaic.version = 11 : i64} {
  func.func @critic_kernel(%arg0: i32, %arg1: memref<8x16xf32, #tpu.memory_space<vmem>>, %arg2: memref<8x4xf32, #tpu.memory_space<vmem>>, %arg3: memref<16x256xbf16, #tpu.memory_space<vmem>>, %arg4: memref<1x256xf32, #tpu.memory_space<vmem>>, %arg5: memref<1x256xf32, #tpu.memory_space<vmem>>, %arg6: memref<1x256xf32, #tpu.memory_space<vmem>>, %arg7: memref<1x256xf32, #tpu.memory_space<vmem>>, %arg8: memref<1x256xf32, #tpu.memory_space<vmem>>, %arg9: memref<256x256xbf16, #tpu.memory_space<vmem>>, %arg10: memref<4x256xbf16, #tpu.memory_space<vmem>>, %arg11: memref<1x256xf32, #tpu.memory_space<vmem>>, %arg12: memref<256x128xbf16, #tpu.memory_space<vmem>>, %arg13: memref<1x128xf32, #tpu.memory_space<vmem>>, %arg14: memref<8x128xf32, #tpu.memory_space<vmem>>) attributes {dimension_semantics = [#tpu.dimension_semantics<parallel>], iteration_bounds = array<i64: 1>, scalar_prefetch = 0 : i64, scratch_operands = 0 : i64, tpu.core_type = #tpu.core_type<tc>, window_params = [{transform_indices = @transform_0, window_bounds = array<i64: 8, 16>}, {transform_indices = @transform_1, window_bounds = array<i64: 8, 4>}, {pipeline_mode = #tpu.pipeline_mode<synchronous>, transform_indices = @transform_2, window_bounds = array<i64: 16, 256>}, {pipeline_mode = #tpu.pipeline_mode<synchronous>, transform_indices = @transform_3, window_bounds = array<i64: 1, 256>}, {pipeline_mode = #tpu.pipeline_mode<synchronous>, transform_indices = @transform_4, window_bounds = array<i64: 1, 256>}, {pipeline_mode = #tpu.pipeline_mode<synchronous>, transform_indices = @transform_5, window_bounds = array<i64: 1, 256>}, {pipeline_mode = #tpu.pipeline_mode<synchronous>, transform_indices = @transform_6, window_bounds = array<i64: 1, 256>}, {pipeline_mode = #tpu.pipeline_mode<synchronous>, transform_indices = @transform_7, window_bounds = array<i64: 1, 256>}, {pipeline_mode = #tpu.pipeline_mode<synchronous>, transform_indices = @transform_8, window_bounds = array<i64: 256, 256>}, {pipeline_mode = #tpu.pipeline_mode<synchronous>, transform_indices = @transform_9, window_bounds = array<i64: 4, 256>}, {pipeline_mode = #tpu.pipeline_mode<synchronous>, transform_indices = @transform_10, window_bounds = array<i64: 1, 256>}, {pipeline_mode = #tpu.pipeline_mode<synchronous>, transform_indices = @transform_11, window_bounds = array<i64: 256, 128>}, {pipeline_mode = #tpu.pipeline_mode<synchronous>, transform_indices = @transform_12, window_bounds = array<i64: 1, 128>}, {transform_indices = @transform_13, window_bounds = array<i64: 8, 128>}]} {
    %c0 = arith.constant 0 : index
    %c0_0 = arith.constant 0 : index
    %0 = vector.load %arg1[%c0, %c0_0] : memref<8x16xf32, #tpu.memory_space<vmem>>, vector<8x16xf32>
    %1 = arith.truncf %0 : vector<8x16xf32> to vector<8x16xbf16>
    %c0_1 = arith.constant 0 : index
    %c0_2 = arith.constant 0 : index
    %2 = vector.load %arg2[%c0_1, %c0_2] : memref<8x4xf32, #tpu.memory_space<vmem>>, vector<8x4xf32>
    %3 = arith.truncf %2 : vector<8x4xf32> to vector<8x4xbf16>
    %c0_3 = arith.constant 0 : index
    %c0_4 = arith.constant 0 : index
    %4 = vector.load %arg3[%c0_3, %c0_4] : memref<16x256xbf16, #tpu.memory_space<vmem>>, vector<16x256xbf16>
    %cst = arith.constant dense<0.000000e+00> : vector<8x256xf32>
    %5 = tpu.matmul %1, %4, %cst {dimension_numbers = #tpu.dot_dimension_numbers<[1], [0], [0], [1], [0, 0, 1, 1], [], []>} : vector<8x16xbf16>, vector<16x256xbf16>, vector<8x256xf32> -> vector<8x256xf32>
    %c0_5 = arith.constant 0 : index
    %c0_6 = arith.constant 0 : index
    %6 = vector.load %arg4[%c0_5, %c0_6] : memref<1x256xf32, #tpu.memory_space<vmem>>, vector<1x256xf32>
    %7 = vector.broadcast %6 : vector<1x256xf32> to vector<8x256xf32>
    %8 = arith.addf %5, %7 : vector<8x256xf32>
    %c0_7 = arith.constant 0 : index
    %c0_8 = arith.constant 0 : index
    %9 = vector.load %arg5[%c0_7, %c0_8] : memref<1x256xf32, #tpu.memory_space<vmem>>, vector<1x256xf32>
    %c0_9 = arith.constant 0 : index
    %c0_10 = arith.constant 0 : index
    %10 = vector.load %arg8[%c0_9, %c0_10] : memref<1x256xf32, #tpu.memory_space<vmem>>, vector<1x256xf32>
    %cst_11 = arith.constant 9.99999974E-6 : f32
    %11 = vector.broadcast %cst_11 : f32 to vector<1x256xf32>
    %12 = arith.addf %10, %11 : vector<1x256xf32>
    %13 = math.rsqrt %12 : vector<1x256xf32>
    %14 = arith.mulf %9, %13 : vector<1x256xf32>
    %c0_12 = arith.constant 0 : index
    %c0_13 = arith.constant 0 : index
    %15 = vector.load %arg7[%c0_12, %c0_13] : memref<1x256xf32, #tpu.memory_space<vmem>>, vector<1x256xf32>
    %16 = vector.broadcast %15 : vector<1x256xf32> to vector<8x256xf32>
    %17 = arith.subf %8, %16 : vector<8x256xf32>
    %18 = vector.broadcast %14 : vector<1x256xf32> to vector<8x256xf32>
    %19 = arith.mulf %17, %18 : vector<8x256xf32>
    %c0_14 = arith.constant 0 : index
    %c0_15 = arith.constant 0 : index
    %20 = vector.load %arg6[%c0_14, %c0_15] : memref<1x256xf32, #tpu.memory_space<vmem>>, vector<1x256xf32>
    %21 = vector.broadcast %20 : vector<1x256xf32> to vector<8x256xf32>
    %22 = arith.addf %19, %21 : vector<8x256xf32>
    %cst_16 = arith.constant 0.000000e+00 : f32
    %23 = vector.broadcast %cst_16 : f32 to vector<8x256xf32>
    %24 = arith.maximumf %22, %23 : vector<8x256xf32>
    %25 = arith.truncf %24 : vector<8x256xf32> to vector<8x256xbf16>
    %c0_17 = arith.constant 0 : index
    %c0_18 = arith.constant 0 : index
    %26 = vector.load %arg9[%c0_17, %c0_18] : memref<256x256xbf16, #tpu.memory_space<vmem>>, vector<256x256xbf16>
    %cst_19 = arith.constant dense<0.000000e+00> : vector<8x256xf32>
    %27 = tpu.matmul %25, %26, %cst_19 {dimension_numbers = #tpu.dot_dimension_numbers<[1], [0], [0], [1], [0, 0, 1, 1], [], []>} : vector<8x256xbf16>, vector<256x256xbf16>, vector<8x256xf32> -> vector<8x256xf32>
    %c0_20 = arith.constant 0 : index
    %c0_21 = arith.constant 0 : index
    %28 = vector.load %arg10[%c0_20, %c0_21] : memref<4x256xbf16, #tpu.memory_space<vmem>>, vector<4x256xbf16>
    %cst_22 = arith.constant dense<0.000000e+00> : vector<8x256xf32>
    %29 = tpu.matmul %3, %28, %cst_22 {dimension_numbers = #tpu.dot_dimension_numbers<[1], [0], [0], [1], [0, 0, 1, 1], [], []>} : vector<8x4xbf16>, vector<4x256xbf16>, vector<8x256xf32> -> vector<8x256xf32>
    %30 = arith.addf %27, %29 : vector<8x256xf32>
    %c0_23 = arith.constant 0 : index
    %c0_24 = arith.constant 0 : index
    %31 = vector.load %arg11[%c0_23, %c0_24] : memref<1x256xf32, #tpu.memory_space<vmem>>, vector<1x256xf32>
    %32 = vector.broadcast %31 : vector<1x256xf32> to vector<8x256xf32>
    %33 = arith.addf %30, %32 : vector<8x256xf32>
    %cst_25 = arith.constant 0.000000e+00 : f32
    %34 = vector.broadcast %cst_25 : f32 to vector<8x256xf32>
    %35 = arith.maximumf %33, %34 : vector<8x256xf32>
    %36 = arith.truncf %35 : vector<8x256xf32> to vector<8x256xbf16>
    %c0_26 = arith.constant 0 : index
    %c0_27 = arith.constant 0 : index
    %37 = vector.load %arg12[%c0_26, %c0_27] : memref<256x128xbf16, #tpu.memory_space<vmem>>, vector<256x128xbf16>
    %cst_28 = arith.constant dense<0.000000e+00> : vector<8x128xf32>
    %38 = tpu.matmul %36, %37, %cst_28 {dimension_numbers = #tpu.dot_dimension_numbers<[1], [0], [0], [1], [0, 0, 1, 1], [], []>} : vector<8x256xbf16>, vector<256x128xbf16>, vector<8x128xf32> -> vector<8x128xf32>
    %c0_29 = arith.constant 0 : index
    %c0_30 = arith.constant 0 : index
    %39 = vector.load %arg13[%c0_29, %c0_30] : memref<1x128xf32, #tpu.memory_space<vmem>>, vector<1x128xf32>
    %40 = vector.broadcast %39 : vector<1x128xf32> to vector<8x128xf32>
    %41 = arith.addf %38, %40 : vector<8x128xf32>
    %c0_31 = arith.constant 0 : index
    %c0_32 = arith.constant 0 : index
    %42 = vector.load %arg14[%c0_31, %c0_32] : memref<8x128xf32, #tpu.memory_space<vmem>>, vector<8x128xf32>
    tpu.vector_store %arg14[%c0_31, %c0_32], %41 {strides = array<i32>} : memref<8x128xf32, #tpu.memory_space<vmem>>, vector<8x128xf32>,
    return
  }
  func.func @transform_0(%arg0: i32) -> (i32, i32) {
    %c0_i32 = arith.constant 0 : i32
    %c0_i32_0 = arith.constant 0 : i32
    return %arg0, %c0_i32 : i32, i32
  }
  func.func @transform_1(%arg0: i32) -> (i32, i32) {
    %c0_i32 = arith.constant 0 : i32
    %c0_i32_0 = arith.constant 0 : i32
    return %arg0, %c0_i32 : i32, i32
  }
  func.func @transform_2(%arg0: i32) -> (i32, i32) {
    %c0_i32 = arith.constant 0 : i32
    %c0_i32_0 = arith.constant 0 : i32
    %c0_i32_1 = arith.constant 0 : i32
    return %c0_i32, %c0_i32_0 : i32, i32
  }
  func.func @transform_3(%arg0: i32) -> (i32, i32) {
    %c0_i32 = arith.constant 0 : i32
    %c0_i32_0 = arith.constant 0 : i32
    %c0_i32_1 = arith.constant 0 : i32
    return %c0_i32, %c0_i32_0 : i32, i32
  }
  func.func @transform_4(%arg0: i32) -> (i32, i32) {
    %c0_i32 = arith.constant 0 : i32
    %c0_i32_0 = arith.constant 0 : i32
    %c0_i32_1 = arith.constant 0 : i32
    return %c0_i32, %c0_i32_0 : i32, i32
  }
  func.func @transform_5(%arg0: i32) -> (i32, i32) {
    %c0_i32 = arith.constant 0 : i32
    %c0_i32_0 = arith.constant 0 : i32
    %c0_i32_1 = arith.constant 0 : i32
    return %c0_i32, %c0_i32_0 : i32, i32
  }
  func.func @transform_6(%arg0: i32) -> (i32, i32) {
    %c0_i32 = arith.constant 0 : i32
    %c0_i32_0 = arith.constant 0 : i32
    %c0_i32_1 = arith.constant 0 : i32
    return %c0_i32, %c0_i32_0 : i32, i32
  }
  func.func @transform_7(%arg0: i32) -> (i32, i32) {
    %c0_i32 = arith.constant 0 : i32
    %c0_i32_0 = arith.constant 0 : i32
    %c0_i32_1 = arith.constant 0 : i32
    return %c0_i32, %c0_i32_0 : i32, i32
  }
  func.func @transform_8(%arg0: i32) -> (i32, i32) {
    %c0_i32 = arith.constant 0 : i32
    %c0_i32_0 = arith.constant 0 : i32
    %c0_i32_1 = arith.constant 0 : i32
    return %c0_i32, %c0_i32_0 : i32, i32
  }
  func.func @transform_9(%arg0: i32) -> (i32, i32) {
    %c0_i32 = arith.constant 0 : i32
    %c0_i32_0 = arith.constant 0 : i32
    %c0_i32_1 = arith.constant 0 : i32
    return %c0_i32, %c0_i32_0 : i32, i32
  }
  func.func @transform_10(%arg0: i32) -> (i32, i32) {
    %c0_i32 = arith.constant 0 : i32
    %c0_i32_0 = arith.constant 0 : i32
    %c0_i32_1 = arith.constant 0 : i32
    return %c0_i32, %c0_i32_0 : i32, i32
  }
  func.func @transform_11(%arg0: i32) -> (i32, i32) {
    %c0_i32 = arith.constant 0 : i32
    %c0_i32_0 = arith.constant 0 : i32
    %c0_i32_1 = arith.constant 0 : i32
    return %c0_i32, %c0_i32_0 : i32, i32
  }
  func.func @transform_12(%arg0: i32) -> (i32, i32) {
    %c0_i32 = arith.constant 0 : i32
    %c0_i32_0 = arith.constant 0 : i32
    %c0_i32_1 = arith.constant 0 : i32
    return %c0_i32, %c0_i32_0 : i32, i32
  }
  func.func @transform_13(%arg0: i32) -> (i32, i32) {
    %c0_i32 = arith.constant 0 : i32
    %c0_i32_0 = arith.constant 0 : i32
    return %arg0, %c0_i32 : i32, i32
  }
}

</mosaic_0001>

<llo_original>
// kernel: critic_forward.1
$region0: #{critic_forward.1}
  #allocation0 [shape = 'u32[]', space=smem, size = 0x4, offset = 0x4, fixed_abs, tag = 'smem constant byte address 0x4 - core index']
  #allocation1 [shape = 'u32[72,128]{1,0:T(1,128)}', space=vmem, size = 0x9000, scoped, tag = 'internal scratch']
  %s0 = inlined_call_operand.vmem [shape: f32[8,16], index: 0, kind: input, shape index: {}]
  %s1 = inlined_call_operand.vmem [shape: f32[8,4], index: 1, kind: input, shape index: {}]
  %s2 = inlined_call_operand.hbm [shape: bf16[16,256], index: 2, kind: input, shape index: {}]
  %s3 = inlined_call_operand.vmem [shape: f32[1,256], index: 3, kind: input, shape index: {}]
  %s4 = inlined_call_operand.hbm [shape: f32[1,256], index: 4, kind: input, shape index: {}]
  %s5 = inlined_call_operand.vmem [shape: f32[1,256], index: 5, kind: input, shape index: {}]
  %s6 = inlined_call_operand.hbm [shape: f32[1,256], index: 6, kind: input, shape index: {}]
  %s7 = inlined_call_operand.vmem [shape: f32[1,256], index: 7, kind: input, shape index: {}]
  %s8 = inlined_call_operand.hbm [shape: bf16[256,256], index: 8, kind: input, shape index: {}]
  %s9 = inlined_call_operand.vmem [shape: bf16[4,256], index: 9, kind: input, shape index: {}]
  %s10 = inlined_call_operand.vmem [shape: f32[1,256], index: 10, kind: input, shape index: {}]
  %s11 = inlined_call_operand.hbm [shape: bf16[256,128], index: 11, kind: input, shape index: {}]
  %s12 = inlined_call_operand.vmem [shape: f32[1,128], index: 12, kind: input, shape index: {}]
  %s13 = inlined_call_operand.vmem [shape: f32[8,128], index: 13, kind: output, shape index: {}]
  %s14 = sld [smem:[#allocation0]]
  $region82: #{critic_forward.1} parent=0
    _
  %s16 = ssub.s32 1, %s14
  %s17 = scalar_select 0, %s16, %s14
  $region1: #{critic_forward.1} parent=0
    #allocation2 [shape = 'u8[8192]{0}', space=vmem, size = 0x2000, scoped, tag = 'input window, operand 2, single buffered']
    #allocation3 [shape = 's32[1]{0}', space=sflag, size = 0x4, scoped, tag = 'scoped memory for critic_forward.1']
    #allocation4 [shape = 'u8[1024]{0}', space=vmem, size = 0x400, scoped, tag = 'input window, operand 4, single buffered']
    #allocation5 [shape = 's32[1]{0}', space=sflag, size = 0x4, scoped, tag = 'scoped memory for critic_forward.1']
    #allocation6 [shape = 'u8[1024]{0}', space=vmem, size = 0x400, scoped, tag = 'input window, operand 6, single buffered']
    #allocation7 [shape = 'u8[131072]{0}', space=vmem, size = 0x20000, scoped, tag = 'input window, operand 8, single buffered']
    #allocation8 [shape = 's32[1]{0}', space=sflag, size = 0x4, scoped, tag = 'scoped memory for critic_forward.1']
    #allocation9 [shape = 'u8[65536]{0}', space=vmem, size = 0x10000, scoped, tag = 'input window, operand 11, single buffered']
    %18 = vsyncpa [#allocation3], 0
    %19 = vsyncpa [#allocation5], 0
    %20 = vsyncpa [#allocation8], 0
    // Predicated region
    $region2: #{critic_forward.1} parent=1 // pred_check
      _
    $region3: #{critic_forward.1} parent=1 // pred_check_branch
      %22 = sbr.rel (0) target = $region5
    $region4: #{critic_forward.1} parent=1 // pred_region
      _
    $region5: #{critic_forward.1} parent=1 // pred_fallthru
      _
    // Predicated region
    $region6: #{critic_forward.1} parent=1 // pred_check
      _
    $region7: #{critic_forward.1} parent=1 // pred_check_branch
      %24 = sbr.rel (0) target = $region9
    $region8: #{critic_forward.1} parent=1 // pred_region
      _
    $region9: #{critic_forward.1} parent=1 // pred_fallthru
      _
    // Predicated region
    $region10: #{critic_forward.1} parent=1 // pred_check
      _
    $region11: #{critic_forward.1} parent=1 // pred_check_branch
      %26 = sbr.rel (0) target = $region13
    $region12: #{critic_forward.1} parent=1 // pred_region
      %28 = vsyncadd [#allocation3], 0
      %s29 = sshll.u32 %s2, 4
      %s30 = int_to_ptr.hbm [resolvable:$true] %s29
      %s31 = sshll.u32 [#allocation2], 4
      %s32 = int_to_ptr.vmem [resolvable:$true] %s31
      %37 = dma.hbm_to_vmem [thread:$0]  %s30, 256, %s32, [#allocation3], 128, 128, 8
    $region13: #{critic_forward.1} parent=1 // pred_fallthru
      _
    // Predicated region
    $region14: #{critic_forward.1} parent=1 // pred_check
      _
    $region15: #{critic_forward.1} parent=1 // pred_check_branch
      %39 = sbr.rel (0) target = $region17
    $region16: #{critic_forward.1} parent=1 // pred_region
      _
    $region17: #{critic_forward.1} parent=1 // pred_fallthru
      _
    // Predicated region
    $region18: #{critic_forward.1} parent=1 // pred_check
      _
    $region19: #{critic_forward.1} parent=1 // pred_check_branch
      %41 = sbr.rel (0) target = $region21
    $region20: #{critic_forward.1} parent=1 // pred_region
      %43 = vsyncadd [#allocation5], 0
      %s45 = sshll.u32 %s4, 4
      %s46 = int_to_ptr.hbm [resolvable:$true] %s45
      %s47 = sshll.u32 [#allocation4], 4
      %s48 = int_to_ptr.vmem [resolvable:$true] %s47
      %50 = dma.hbm_to_vmem [thread:$0]  %s46, 32, %s48, [#allocation5]
    $region21: #{critic_forward.1} parent=1 // pred_fallthru
      _
    // Predicated region
    $region22: #{critic_forward.1} parent=1 // pred_check
      _
    $region23: #{critic_forward.1} parent=1 // pred_check_branch
      %52 = sbr.rel (0) target = $region25
    $region24: #{critic_forward.1} parent=1 // pred_region
      _
    $region25: #{critic_forward.1} parent=1 // pred_fallthru
      _
    // Predicated region
    $region26: #{critic_forward.1} parent=1 // pred_check
      _
    $region27: #{critic_forward.1} parent=1 // pred_check_branch
      %54 = sbr.rel (0) target = $region29
    $region28: #{critic_forward.1} parent=1 // pred_region
      %56 = vsyncadd [#allocation5], 0
      %s58 = sshll.u32 %s6, 4
      %s59 = int_to_ptr.hbm [resolvable:$true] %s58
      %s60 = sshll.u32 [#allocation6], 4
      %s61 = int_to_ptr.vmem [resolvable:$true] %s60
      %63 = dma.hbm_to_vmem [thread:$0]  %s59, 32, %s61, [#allocation5]
    $region29: #{critic_forward.1} parent=1 // pred_fallthru
      _
    // Predicated region
    $region30: #{critic_forward.1} parent=1 // pred_check
      _
    $region31: #{critic_forward.1} parent=1 // pred_check_branch
      %65 = sbr.rel (0) target = $region33
    $region32: #{critic_forward.1} parent=1 // pred_region
      _
    $region33: #{critic_forward.1} parent=1 // pred_fallthru
      _
    // Predicated region
    $region34: #{critic_forward.1} parent=1 // pred_check
      _
    $region35: #{critic_forward.1} parent=1 // pred_check_branch
      %67 = sbr.rel (0) target = $region37
    $region36: #{critic_forward.1} parent=1 // pred_region
      %69 = vsyncadd [#allocation8], 0
      %s70 = sshll.u32 %s8, 4
      %s71 = int_to_ptr.hbm [resolvable:$true] %s70
      %s72 = sshll.u32 [#allocation7], 4
      %s73 = int_to_ptr.vmem [resolvable:$true] %s72
      %78 = dma.hbm_to_vmem [thread:$0]  %s71, 4096, %s73, [#allocation8], 128, 128, 8
    $region37: #{critic_forward.1} parent=1 // pred_fallthru
      _
    // Predicated region
    $region38: #{critic_forward.1} parent=1 // pred_check
      _
    $region39: #{critic_forward.1} parent=1 // pred_check_branch
      %80 = sbr.rel (0) target = $region41
    $region40: #{critic_forward.1} parent=1 // pred_region
      _
    $region41: #{critic_forward.1} parent=1 // pred_fallthru
      _
    // Predicated region
    $region42: #{critic_forward.1} parent=1 // pred_check
      _
    $region43: #{critic_forward.1} parent=1 // pred_check_branch
      %82 = sbr.rel (0) target = $region45
    $region44: #{critic_forward.1} parent=1 // pred_region
      _
    $region45: #{critic_forward.1} parent=1 // pred_fallthru
      _
    // Predicated region
    $region46: #{critic_forward.1} parent=1 // pred_check
      _
    $region47: #{critic_forward.1} parent=1 // pred_check_branch
      %84 = sbr.rel (0) target = $region49
    $region48: #{critic_forward.1} parent=1 // pred_region
      %86 = vsyncadd [#allocation8], 0
      %s87 = sshll.u32 %s11, 4
      %s88 = int_to_ptr.hbm [resolvable:$true] %s87
      %s89 = sshll.u32 [#allocation9], 4
      %s90 = int_to_ptr.vmem [resolvable:$true] %s89
      %95 = dma.hbm_to_vmem [thread:$0]  %s88, 2048, %s90, [#allocation8], 64, 64, 4
    $region49: #{critic_forward.1} parent=1 // pred_fallthru
      _
    // Predicated region
    $region50: #{critic_forward.1} parent=1 // pred_check
      _
    $region51: #{critic_forward.1} parent=1 // pred_check_branch
      %97 = sbr.rel (0) target = $region53
    $region52: #{critic_forward.1} parent=1 // pred_region
      _
    $region53: #{critic_forward.1} parent=1 // pred_fallthru
      _
    // Predicated region
    $region54: #{critic_forward.1} parent=1 // pred_check
      _
    $region55: #{critic_forward.1} parent=1 // pred_check_branch
      %99 = sbr.rel (0) target = $region57
    $region56: #{critic_forward.1} parent=1 // pred_region
      %101 = dma.done [#allocation3], 256
    $region57: #{critic_forward.1} parent=1 // pred_fallthru
      _
    // Predicated region
    $region58: #{critic_forward.1} parent=1 // pred_check
      _
    $region59: #{critic_forward.1} parent=1 // pred_check_branch
      %103 = sbr.rel (0) target = $region61
    $region60: #{critic_forward.1} parent=1 // pred_region
      %105 = dma.done [#allocation5], 32
    $region61: #{critic_forward.1} parent=1 // pred_fallthru
      _
    // Predicated region
    $region62: #{critic_forward.1} parent=1 // pred_check
      _
    $region63: #{critic_forward.1} parent=1 // pred_check_branch
      %107 = sbr.rel (0) target = $region65
    $region64: #{critic_forward.1} parent=1 // pred_region
      %109 = dma.done [#allocation5], 32
    $region65: #{critic_forward.1} parent=1 // pred_fallthru
      _
    // Predicated region
    $region66: #{critic_forward.1} parent=1 // pred_check
      _
    $region67: #{critic_forward.1} parent=1 // pred_check_branch
      %111 = sbr.rel (0) target = $region69
    $region68: #{critic_forward.1} parent=1 // pred_region
      %113 = dma.done [#allocation8], 4096
    $region69: #{critic_forward.1} parent=1 // pred_fallthru
      _
    // Predicated region
    $region70: #{critic_forward.1} parent=1 // pred_check
      _
    $region71: #{critic_forward.1} parent=1 // pred_check_branch
      %115 = sbr.rel (0) target = $region73
    $region72: #{critic_forward.1} parent=1 // pred_region
      %117 = dma.done [#allocation8], 2048
    $region73: #{critic_forward.1} parent=1 // pred_fallthru
      _
    %v119 = vld [vmem:[%s0] sm:$0xff]
    %v120 = vpack.c.bf16 %v119, %v119
    %v121 = vld [vmem:[%s1] sm:$0xff]
    %v122 = vpack.c.bf16 %v121, %v121
    %v123 = vld [vmem:[#allocation2] sm:$0xff]
    %v124 = vld [vmem:[#allocation2 + $0x8] sm:$0xff]
    %v125 = vld [vmem:[%s3] sm:$0x3]
    %v127 = vperm.slane %v125, 0
    %v128 = vperm.slane %v125, 1
    %v133 = vunpack.c.l.b16 %v123
    %v134 = vunpack.c.h.b16 %v123
    %v135 = vunpack.c.l.b16 %v124
    %v136 = vunpack.c.h.b16 %v124
    %v137 = vpack.c.b16 %v135, %v133
    %v138 = vpack.c.b16 %v136, %v134
    %vm141 = vcmask 130048
    %v143 = vsel %vm141, %v120, 0
    %145 = vmatpush.bf16.msra.mxu0 0
    %146 = vmatpush.bf16.msra.mxu0 0
    %147 = vmatpush.bf16.msra.mxu0 0
    %148 = vmatpush.bf16.msra.mxu0 0
    %149 = vmatpush.bf16.msra.mxu0 0
    %150 = vmatpush.bf16.msra.mxu0 0
    %151 = vmatpush.bf16.msra.mxu0 0
    %152 = vmatpush.bf16.msra.mxu0 %v137
    %153 = vmatmul.bf16.gmra.mxu0 %v143
    %v154 = vpop.f32.mrf.mxu0
    %v155 = vadd.f32 %v127, %v154
    %v156 = vpop.f32.mrf.mxu0
    %157 = vdwg.mxu0
    %158 = vmatpush.bf16.msra.mxu0 0
    %159 = vmatpush.bf16.msra.mxu0 0
    %160 = vmatpush.bf16.msra.mxu0 0
    %161 = vmatpush.bf16.msra.mxu0 0
    %162 = vmatpush.bf16.msra.mxu0 0
    %163 = vmatpush.bf16.msra.mxu0 0
    %164 = vmatpush.bf16.msra.mxu0 0
    %165 = vmatpush.bf16.msra.mxu0 %v138
    %166 = vmatmul.bf16.gmra.mxu0 %v143
    %v167 = vpop.f32.mrf.mxu0
    %v168 = vadd.f32 %v128, %v167
    %v169 = vpop.f32.mrf.mxu0
    %170 = vdwg.mxu0
    %v171 = vld [vmem:[#allocation4] sm:$0x3]
    %v172 = vld [vmem:[%s7] sm:$0x3]
    %v173 = vadd.f32 %v172, 1e-05
    %v174 = vrsqrt.pop %v173
    %v175 = vmul.f32 %v174, %v173
    %v176 = vmul.f32 %v175, %v174
    %v177 = vmul.f32 0.5, %v176
    %v178 = vsub.f32 1.5, %v177
    %v179 = vmul.f32 %v174, %v178
    %vm180 = vweird.f32 %v173
    %vm181 = vweird.f32 %v174
    %vm182 = vmor %vm180, %vm181
    %v183 = vsel %vm182, %v174, %v179
    %v184 = vmul.f32 %v171, %v183
    %v185 = vld [vmem:[#allocation6] sm:$0x3]
    %v187 = vperm.slane %v185, 0
    %v188 = vperm.slane %v185, 1
    %v191 = vsub.f32 %v155, %v187
    %v192 = vsub.f32 %v168, %v188
    %v194 = vperm.slane %v184, 0
    %v195 = vperm.slane %v184, 1
    %v198 = vmul.f32 %v191, %v194
    %v199 = vmul.f32 %v192, %v195
    %v200 = vld [vmem:[%s5] sm:$0x3]
    %v202 = vperm.slane %v200, 0
    %v203 = vperm.slane %v200, 1
    %v206 = vadd.f32 %v198, %v202
    %v207 = vadd.f32 %v199, %v203
    %v208 = vmax.f32 %v206, 0.0
    %v209 = vmax.f32 %v207, 0.0
    %v210 = vpack.c.bf16 %v208, %v208
    %v211 = vpack.c.bf16 %v209, %v209
    %v212 = vld [vmem:[#allocation7] sm:$0xff]
    %v213 = vld [vmem:[#allocation7 + $0x8] sm:$0xff]
    %v214 = vld [vmem:[#allocation7 + $0x10] sm:$0xff]
    %v215 = vld [vmem:[#allocation7 + $0x18] sm:$0xff]
    %v216 = vld [vmem:[#allocation7 + $0x20] sm:$0xff]
    %v217 = vld [vmem:[#allocation7 + $0x28] sm:$0xff]
    %v218 = vld [vmem:[#allocation7 + $0x30] sm:$0xff]
    %v219 = vld [vmem:[#allocation7 + $0x38] sm:$0xff]
    %v220 = vld [vmem:[#allocation7 + $0x40] sm:$0xff]
    %v221 = vld [vmem:[#allocation7 + $0x48] sm:$0xff]
    %v222 = vld [vmem:[#allocation7 + $0x50] sm:$0xff]
    %v223 = vld [vmem:[#allocation7 + $0x58] sm:$0xff]
    %v224 = vld [vmem:[#allocation7 + $0x60] sm:$0xff]
    %v225 = vld [vmem:[#allocation7 + $0x68] sm:$0xff]
    %v226 = vld [vmem:[#allocation7 + $0x70] sm:$0xff]
    %v227 = vld [vmem:[#allocation7 + $0x78] sm:$0xff]
    %v228 = vld [vmem:[#allocation7 + $0x80] sm:$0xff]
    %v229 = vld [vmem:[#allocation7 + $0x88] sm:$0xff]
    %v230 = vld [vmem:[#allocation7 + $0x90] sm:$0xff]
    %v231 = vld [vmem:[#allocation7 + $0x98] sm:$0xff]
    %v232 = vld [vmem:[#allocation7 + $0xa0] sm:$0xff]
    %v233 = vld [vmem:[#allocation7 + $0xa8] sm:$0xff]
    %v234 = vld [vmem:[#allocation7 + $0xb0] sm:$0xff]
    %v235 = vld [vmem:[#allocation7 + $0xb8] sm:$0xff]
    %v236 = vld [vmem:[#allocation7 + $0xc0] sm:$0xff]
    %v237 = vld [vmem:[#allocation7 + $0xc8] sm:$0xff]
    %v238 = vld [vmem:[#allocation7 + $0xd0] sm:$0xff]
    %v239 = vld [vmem:[#allocation7 + $0xd8] sm:$0xff]
    %v240 = vld [vmem:[#allocation7 + $0xe0] sm:$0xff]
    %v241 = vld [vmem:[#allocation7 + $0xe8] sm:$0xff]
    %v242 = vld [vmem:[#allocation7 + $0xf0] sm:$0xff]
    %v243 = vld [vmem:[#allocation7 + $0xf8] sm:$0xff]
    %v244 = vld [vmem:[%s9] sm:$0xf]
    %246 = vst [vmem:[#allocation1] ss:$4 sm:$0xff] %v244
    %v247 = vld.sshfl [vmem:[#allocation1] sm:$0xff pattern:$0x73625140]
    %v248 = vld.sshfl [vmem:[#allocation1 + $0x8] sm:$0xff pattern:$0x73625140]
    %vm249 = vcmask 31744
    %v251 = vsel %vm249, %v122, 0
    %vm253 = vcmask 1041408
    %v254 = vsel %vm253, %v247, 0
    %v256 = vsel %vm253, %v248, 0
    %258 = vmatpush.bf16.msra.mxu0 0
    %259 = vmatpush.bf16.msra.mxu0 0
    %260 = vmatpush.bf16.msra.mxu0 0
    %261 = vmatpush.bf16.msra.mxu0 0
    %262 = vmatpush.bf16.msra.mxu0 0
    %263 = vmatpush.bf16.msra.mxu0 0
    %264 = vmatpush.bf16.msra.mxu0 0
    %265 = vmatpush.bf16.msra.mxu0 %v254
    %266 = vmatmul.bf16.gmra.mxu0 %v251
    %v267 = vpop.f32.mrf.mxu0
    %v268 = vadd.f32 0.0, %v267
    %v269 = vpop.f32.mrf.mxu0
    %270 = vdwg.mxu0
    %271 = vmatpush.bf16.msra.mxu0 0
    %272 = vmatpush.bf16.msra.mxu0 0
    %273 = vmatpush.bf16.msra.mxu0 0
    %274 = vmatpush.bf16.msra.mxu0 0
    %275 = vmatpush.bf16.msra.mxu0 0
    %276 = vmatpush.bf16.msra.mxu0 0
    %277 = vmatpush.bf16.msra.mxu0 0
    %278 = vmatpush.bf16.msra.mxu0 %v256
    %279 = vmatmul.bf16.gmra.mxu0 %v251
    %v280 = vpop.f32.mrf.mxu0
    %v281 = vadd.f32 0.0, %v280
    %v282 = vpop.f32.mrf.mxu0
    %283 = vdwg.mxu0
    %v316 = vunpack.c.l.b16 %v212
    %v317 = vunpack.c.h.b16 %v212
    %v318 = vunpack.c.l.b16 %v213
    %v319 = vunpack.c.h.b16 %v213
    %v320 = vunpack.c.l.b16 %v214
    %v321 = vunpack.c.h.b16 %v214
    %v322 = vunpack.c.l.b16 %v215
    %v323 = vunpack.c.h.b16 %v215
    %v324 = vunpack.c.l.b16 %v216
    %v325 = vunpack.c.h.b16 %v216
    %v326 = vunpack.c.l.b16 %v217
    %v327 = vunpack.c.h.b16 %v217
    %v328 = vunpack.c.l.b16 %v218
    %v329 = vunpack.c.h.b16 %v218
    %v330 = vunpack.c.l.b16 %v219
    %v331 = vunpack.c.h.b16 %v219
    %v332 = vunpack.c.l.b16 %v220
    %v333 = vunpack.c.h.b16 %v220
    %v334 = vunpack.c.l.b16 %v221
    %v335 = vunpack.c.h.b16 %v221
    %v336 = vunpack.c.l.b16 %v222
    %v337 = vunpack.c.h.b16 %v222
    %v338 = vunpack.c.l.b16 %v223
    %v339 = vunpack.c.h.b16 %v223
    %v340 = vunpack.c.l.b16 %v224
    %v341 = vunpack.c.h.b16 %v224
    %v342 = vunpack.c.l.b16 %v225
    %v343 = vunpack.c.h.b16 %v225
    %v344 = vunpack.c.l.b16 %v226
    %v345 = vunpack.c.h.b16 %v226
    %v346 = vunpack.c.l.b16 %v227
    %v347 = vunpack.c.h.b16 %v227
    %v348 = vunpack.c.l.b16 %v228
    %v349 = vunpack.c.h.b16 %v228
    %v350 = vunpack.c.l.b16 %v229
    %v351 = vunpack.c.h.b16 %v229
    %v352 = vunpack.c.l.b16 %v230
    %v353 = vunpack.c.h.b16 %v230
    %v354 = vunpack.c.l.b16 %v231
    %v355 = vunpack.c.h.b16 %v231
    %v356 = vunpack.c.l.b16 %v232
    %v357 = vunpack.c.h.b16 %v232
    %v358 = vunpack.c.l.b16 %v233
    %v359 = vunpack.c.h.b16 %v233
    %v360 = vunpack.c.l.b16 %v234
    %v361 = vunpack.c.h.b16 %v234
    %v362 = vunpack.c.l.b16 %v235
    %v363 = vunpack.c.h.b16 %v235
    %v364 = vunpack.c.l.b16 %v236
    %v365 = vunpack.c.h.b16 %v236
    %v366 = vunpack.c.l.b16 %v237
    %v367 = vunpack.c.h.b16 %v237
    %v368 = vunpack.c.l.b16 %v238
    %v369 = vunpack.c.h.b16 %v238
    %v370 = vunpack.c.l.b16 %v239
    %v371 = vunpack.c.h.b16 %v239
    %v372 = vunpack.c.l.b16 %v240
    %v373 = vunpack.c.h.b16 %v240
    %v374 = vunpack.c.l.b16 %v241
    %v375 = vunpack.c.h.b16 %v241
    %v376 = vunpack.c.l.b16 %v242
    %v377 = vunpack.c.h.b16 %v242
    %v378 = vunpack.c.l.b16 %v243
    %v379 = vunpack.c.h.b16 %v243
    %v380 = vpack.c.b16 %v318, %v316
    %v381 = vpack.c.b16 %v319, %v317
    %v382 = vpack.c.b16 %v322, %v320
    %v383 = vpack.c.b16 %v323, %v321
    %v384 = vpack.c.b16 %v326, %v324
    %v385 = vpack.c.b16 %v327, %v325
    %v386 = vpack.c.b16 %v330, %v328
    %v387 = vpack.c.b16 %v331, %v329
    %v388 = vpack.c.b16 %v334, %v332
    %v389 = vpack.c.b16 %v335, %v333
    %v390 = vpack.c.b16 %v338, %v336
    %v391 = vpack.c.b16 %v339, %v337
    %v392 = vpack.c.b16 %v342, %v340
    %v393 = vpack.c.b16 %v343, %v341
    %v394 = vpack.c.b16 %v346, %v344
    %v395 = vpack.c.b16 %v347, %v345
    %v396 = vpack.c.b16 %v350, %v348
    %v397 = vpack.c.b16 %v351, %v349
    %v398 = vpack.c.b16 %v354, %v352
    %v399 = vpack.c.b16 %v355, %v353
    %v400 = vpack.c.b16 %v358, %v356
    %v401 = vpack.c.b16 %v359, %v357
    %v402 = vpack.c.b16 %v362, %v360
    %v403 = vpack.c.b16 %v363, %v361
    %v404 = vpack.c.b16 %v366, %v364
    %v405 = vpack.c.b16 %v367, %v365
    %v406 = vpack.c.b16 %v370, %v368
    %v407 = vpack.c.b16 %v371, %v369
    %v408 = vpack.c.b16 %v374, %v372
    %v409 = vpack.c.b16 %v375, %v373
    %v410 = vpack.c.b16 %v378, %v376
    %v411 = vpack.c.b16 %v379, %v377
    %444 = vmatpush.bf16.msra.mxu0 %v394
    %445 = vmatpush.bf16.msra.mxu0 %v392
    %446 = vmatpush.bf16.msra.mxu0 %v390
    %447 = vmatpush.bf16.msra.mxu0 %v388
    %448 = vmatpush.bf16.msra.mxu0 %v386
    %449 = vmatpush.bf16.msra.mxu0 %v384
    %450 = vmatpush.bf16.msra.mxu0 %v382
    %451 = vmatpush.bf16.msra.mxu0 %v380
    %452 = vmatmul.bf16.gmra.mxu0 %v210
    %v453 = vpop.f32.mrf.mxu0
    %v454 = vadd.f32 %v268, %v453
    %v455 = vpop.f32.mrf.mxu0
    %456 = vdwg.mxu0
    %457 = vmatpush.bf16.msra.mxu0 %v410
    %458 = vmatpush.bf16.msra.mxu0 %v408
    %459 = vmatpush.bf16.msra.mxu0 %v406
    %460 = vmatpush.bf16.msra.mxu0 %v404
    %461 = vmatpush.bf16.msra.mxu0 %v402
    %462 = vmatpush.bf16.msra.mxu0 %v400
    %463 = vmatpush.bf16.msra.mxu0 %v398
    %464 = vmatpush.bf16.msra.mxu0 %v396
    %465 = vmatmul.bf16.gmra.mxu0 %v211
    %v466 = vpop.f32.mrf.mxu0
    %v467 = vadd.f32 %v454, %v466
    %v468 = vpop.f32.mrf.mxu0
    %469 = vdwg.mxu0
    %470 = vmatpush.bf16.msra.mxu0 %v395
    %471 = vmatpush.bf16.msra.mxu0 %v393
    %472 = vmatpush.bf16.msra.mxu0 %v391
    %473 = vmatpush.bf16.msra.mxu0 %v389
    %474 = vmatpush.bf16.msra.mxu0 %v387
    %475 = vmatpush.bf16.msra.mxu0 %v385
    %476 = vmatpush.bf16.msra.mxu0 %v383
    %477 = vmatpush.bf16.msra.mxu0 %v381
    %478 = vmatmul.bf16.gmra.mxu0 %v210
    %v479 = vpop.f32.mrf.mxu0
    %v480 = vadd.f32 %v281, %v479
    %v481 = vpop.f32.mrf.mxu0
    %482 = vdwg.mxu0
    %483 = vmatpush.bf16.msra.mxu0 %v411
    %484 = vmatpush.bf16.msra.mxu0 %v409
    %485 = vmatpush.bf16.msra.mxu0 %v407
    %486 = vmatpush.bf16.msra.mxu0 %v405
    %487 = vmatpush.bf16.msra.mxu0 %v403
    %488 = vmatpush.bf16.msra.mxu0 %v401
    %489 = vmatpush.bf16.msra.mxu0 %v399
    %490 = vmatpush.bf16.msra.mxu0 %v397
    %491 = vmatmul.bf16.gmra.mxu0 %v211
    %v492 = vpop.f32.mrf.mxu0
    %v493 = vadd.f32 %v480, %v492
    %v494 = vpop.f32.mrf.mxu0
    %495 = vdwg.mxu0
    %v496 = vld [vmem:[%s10] sm:$0x3]
    %v498 = vperm.slane %v496, 0
    %v499 = vperm.slane %v496, 1
    %v502 = vadd.f32 %v467, %v498
    %v503 = vadd.f32 %v493, %v499
    %v504 = vmax.f32 %v502, 0.0
    %v505 = vmax.f32 %v503, 0.0
    %v506 = vpack.c.bf16 %v504, %v504
    %v507 = vpack.c.bf16 %v505, %v505
    %v508 = vld [vmem:[#allocation9] sm:$0xf]
    %v509 = vld [vmem:[#allocation9 + $0x4] sm:$0xf]
    %v510 = vld [vmem:[#allocation9 + $0x8] sm:$0xf]
    %v511 = vld [vmem:[#allocation9 + $0xc] sm:$0xf]
    %v512 = vld [vmem:[#allocation9 + $0x10] sm:$0xf]
    %v513 = vld [vmem:[#allocation9 + $0x14] sm:$0xf]
    %v514 = vld [vmem:[#allocation9 + $0x18] sm:$0xf]
    %v515 = vld [vmem:[#allocation9 + $0x1c] sm:$0xf]
    %v516 = vld [vmem:[#allocation9 + $0x20] sm:$0xf]
    %v517 = vld [vmem:[#allocation9 + $0x24] sm:$0xf]
    %v518 = vld [vmem:[#allocation9 + $0x28] sm:$0xf]
    %v519 = vld [vmem:[#allocation9 + $0x2c] sm:$0xf]
    %v520 = vld [vmem:[#allocation9 + $0x30] sm:$0xf]
    %v521 = vld [vmem:[#allocation9 + $0x34] sm:$0xf]
    %v522 = vld [vmem:[#allocation9 + $0x38] sm:$0xf]
    %v523 = vld [vmem:[#allocation9 + $0x3c] sm:$0xf]
    %v524 = vld [vmem:[#allocation9 + $0x40] sm:$0xf]
    %v525 = vld [vmem:[#allocation9 + $0x44] sm:$0xf]
    %v526 = vld [vmem:[#allocation9 + $0x48] sm:$0xf]
    %v527 = vld [vmem:[#allocation9 + $0x4c] sm:$0xf]
    %v528 = vld [vmem:[#allocation9 + $0x50] sm:$0xf]
    %v529 = vld [vmem:[#allocation9 + $0x54] sm:$0xf]
    %v530 = vld [vmem:[#allocation9 + $0x58] sm:$0xf]
    %v531 = vld [vmem:[#allocation9 + $0x5c] sm:$0xf]
    %v532 = vld [vmem:[#allocation9 + $0x60] sm:$0xf]
    %v533 = vld [vmem:[#allocation9 + $0x64] sm:$0xf]
    %v534 = vld [vmem:[#allocation9 + $0x68] sm:$0xf]
    %v535 = vld [vmem:[#allocation9 + $0x6c] sm:$0xf]
    %v536 = vld [vmem:[#allocation9 + $0x70] sm:$0xf]
    %v537 = vld [vmem:[#allocation9 + $0x74] sm:$0xf]
    %v538 = vld [vmem:[#allocation9 + $0x78] sm:$0xf]
    %v539 = vld [vmem:[#allocation9 + $0x7c] sm:$0xf]
    %v540 = vld [vmem:[%s12] sm:$0x1]
    %v542 = vperm.slane %v540, 0
    %v576 = vunpack.c.l.b16 %v508
    %v577 = vunpack.c.l.b16 %v509
    %v578 = vunpack.c.l.b16 %v510
    %v579 = vunpack.c.l.b16 %v511
    %v580 = vunpack.c.l.b16 %v512
    %v581 = vunpack.c.l.b16 %v513
    %v582 = vunpack.c.l.b16 %v514
    %v583 = vunpack.c.l.b16 %v515
    %v584 = vunpack.c.l.b16 %v516
    %v585 = vunpack.c.l.b16 %v517
    %v586 = vunpack.c.l.b16 %v518
    %v587 = vunpack.c.l.b16 %v519
    %v588 = vunpack.c.l.b16 %v520
    %v589 = vunpack.c.l.b16 %v521
    %v590 = vunpack.c.l.b16 %v522
    %v591 = vunpack.c.l.b16 %v523
    %v592 = vunpack.c.l.b16 %v524
    %v593 = vunpack.c.l.b16 %v525
    %v594 = vunpack.c.l.b16 %v526
    %v595 = vunpack.c.l.b16 %v527
    %v596 = vunpack.c.l.b16 %v528
    %v597 = vunpack.c.l.b16 %v529
    %v598 = vunpack.c.l.b16 %v530
    %v599 = vunpack.c.l.b16 %v531
    %v600 = vunpack.c.l.b16 %v532
    %v601 = vunpack.c.l.b16 %v533
    %v602 = vunpack.c.l.b16 %v534
    %v603 = vunpack.c.l.b16 %v535
    %v604 = vunpack.c.l.b16 %v536
    %v605 = vunpack.c.l.b16 %v537
    %v606 = vunpack.c.l.b16 %v538
    %v607 = vunpack.c.l.b16 %v539
    %v608 = vpack.c.b16 %v577, %v576
    %v609 = vpack.c.b16 %v579, %v578
    %v610 = vpack.c.b16 %v581, %v580
    %v611 = vpack.c.b16 %v583, %v582
    %v612 = vpack.c.b16 %v585, %v584
    %v613 = vpack.c.b16 %v587, %v586
    %v614 = vpack.c.b16 %v589, %v588
    %v615 = vpack.c.b16 %v591, %v590
    %v616 = vpack.c.b16 %v593, %v592
    %v617 = vpack.c.b16 %v595, %v594
    %v618 = vpack.c.b16 %v597, %v596
    %v619 = vpack.c.b16 %v599, %v598
    %v620 = vpack.c.b16 %v601, %v600
    %v621 = vpack.c.b16 %v603, %v602
    %v622 = vpack.c.b16 %v605, %v604
    %v623 = vpack.c.b16 %v607, %v606
    %640 = vmatpush.bf16.msra.mxu0 %v615
    %641 = vmatpush.bf16.msra.mxu0 %v614
    %642 = vmatpush.bf16.msra.mxu0 %v613
    %643 = vmatpush.bf16.msra.mxu0 %v612
    %644 = vmatpush.bf16.msra.mxu0 %v611
    %645 = vmatpush.bf16.msra.mxu0 %v610
    %646 = vmatpush.bf16.msra.mxu0 %v609
    %647 = vmatpush.bf16.msra.mxu0 %v608
    %648 = vmatmul.bf16.gmra.mxu0 %v506
    %v649 = vpop.f32.mrf.mxu0
    %v650 = vadd.f32 %v542, %v649
    %v651 = vpop.f32.mrf.mxu0
    %652 = vdwg.mxu0
    %653 = vmatpush.bf16.msra.mxu0 %v623
    %654 = vmatpush.bf16.msra.mxu0 %v622
    %655 = vmatpush.bf16.msra.mxu0 %v621
    %656 = vmatpush.bf16.msra.mxu0 %v620
    %657 = vmatpush.bf16.msra.mxu0 %v619
    %658 = vmatpush.bf16.msra.mxu0 %v618
    %659 = vmatpush.bf16.msra.mxu0 %v617
    %660 = vmatpush.bf16.msra.mxu0 %v616
    %661 = vmatmul.bf16.gmra.mxu0 %v507
    %v662 = vpop.f32.mrf.mxu0
    %v663 = vadd.f32 %v650, %v662
    %v664 = vpop.f32.mrf.mxu0
    %665 = vdwg.mxu0
    %666 = vst [vmem:[%s13] sm:$0xff] %v663
    // Predicated region
    $region74: #{critic_forward.1} parent=1 // pred_check
      _
    $region75: #{critic_forward.1} parent=1 // pred_check_branch
      %668 = sbr.rel (0) target = $region77
    $region76: #{critic_forward.1} parent=1 // pred_region
      _
    $region77: #{critic_forward.1} parent=1 // pred_fallthru
      _
    // Predicated region
    $region78: #{critic_forward.1} parent=1 // pred_check
      _
    $region79: #{critic_forward.1} parent=1 // pred_check_branch
      %670 = sbr.rel (0) target = $region81
    $region80: #{critic_forward.1} parent=1 // pred_region
      _
    $region81: #{critic_forward.1} parent=1 // pred_fallthru
      _
    %671 = vsyncpa [#allocation3], 1
    %672 = vsyncpa [#allocation5], 1
    %673 = vsyncpa [#allocation8], 1

</llo_original>
